<compile_context>
chip_gen: v5e
topology: v5e:2x2
jax: 0.10.0
libtpu: 0.0.40
codegen_flags: <defaults>
</compile_context>

<pallas_src>
import functools
import inspect
from typing import NamedTuple, Tuple

import jax
import jax.numpy as jnp
from jax.experimental import pallas as pl
from jax.experimental.pallas import tpu as pltpu


def _round_up(x, m):
    return ((x + m - 1) // m) * m


def _cdiv(a, b):
    return -(-a // b)


# ---------------------------------------------------------------------------
# Cached hardware queries / feature probes (run OUTSIDE jit tracing).
# ---------------------------------------------------------------------------
_VMEM_CAP_BYTES = None
_SINGLE_BUFFER_OK = None


def _vmem_capacity_bytes():
    """Per-core VMEM capacity (128 MiB v5e/v6e, 64 MiB v7x); cached."""
    global _VMEM_CAP_BYTES
    if _VMEM_CAP_BYTES is None:
        cap = None
        try:
            cap = int(pltpu.get_tpu_info().vmem_capacity_bytes)
        except Exception:
            cap = None
        if not cap or cap <= 0:
            cap = 64 * 1024 * 1024          # conservative fallback (v7x floor)
        _VMEM_CAP_BYTES = cap
    return _VMEM_CAP_BYTES


def _single_buffer_supported():
    """Probe whether pipeline_mode=pl.Buffered(1) lowers & runs; cached."""
    global _SINGLE_BUFFER_OK
    if _SINGLE_BUFFER_OK is None:
        ok = (hasattr(pl, "Buffered")
              and "pipeline_mode" in inspect.signature(pl.BlockSpec).parameters)
        if ok:
            try:
                def _probe_kernel(x_ref, o_ref):
                    o_ref[...] = x_ref[...] + 1.0

                with jax.ensure_compile_time_eval():
                    probe = pl.pallas_call(
                        _probe_kernel,
                        out_shape=jax.ShapeDtypeStruct((8, 128), jnp.float32),
                        grid=(2,),
                        in_specs=[pl.BlockSpec((8, 128), lambda i: (0, 0),
                                               pipeline_mode=pl.Buffered(1))],
                        out_specs=pl.BlockSpec((8, 128), lambda i: (0, 0)),
                    )
                    jax.block_until_ready(probe(jnp.zeros((8, 128), jnp.float32)))
            except Exception:
                ok = False
        _SINGLE_BUFFER_OK = ok
    return _SINGLE_BUFFER_OK


# ---------------------------------------------------------------------------
# Parameter preparation (padding / casting hoisted out of the hot path).
# ---------------------------------------------------------------------------
class MLPMeta(NamedTuple):
    in_dim: int
    out_dims: Tuple[int, ...]


def prepare_mlp_params(weights, biases):
    """Pad + cast parameters ONCE (not per forward call).

    Returns (w_ps, b_pack, meta):
      w_ps:   tuple of lane-padded bf16 (in_pad_i, out_pad_i) weights
      b_pack: (L, max_out_pad) f32 packed biases (single resident tile)
      meta:   hashable static shape info for padding / slicing.
    """
    num_layers = len(weights)
    in_dim = int(weights[0].shape[0])
    out_dims = tuple(int(w.shape[1]) for w in weights)
    in_pads = (_round_up(in_dim, 128),) + tuple(
        _round_up(d, 128) for d in out_dims[:-1])
    out_pads = tuple(_round_up(d, 128) for d in out_dims)
    max_out_pad = max(out_pads)

    w_ps = []
    for w, ip, op in zip(weights, in_pads, out_pads):
        w = jnp.asarray(w, jnp.float32)
        w_p = jnp.zeros((ip, op), jnp.bfloat16).at[
            :w.shape[0], :w.shape[1]].set(w.astype(jnp.bfloat16))
        w_ps.append(w_p)

    b_pack = jnp.zeros((num_layers, max_out_pad), jnp.float32)
    for i, b in enumerate(biases):
        b = jnp.asarray(b, jnp.float32)
        b_pack = b_pack.at[i, :b.shape[0]].set(b)

    # Warm hardware/feature caches eagerly (never inside a jit trace).
    _vmem_capacity_bytes()
    _single_buffer_supported()

    return tuple(w_ps), b_pack, MLPMeta(in_dim=in_dim, out_dims=out_dims)


# ---------------------------------------------------------------------------
# Fused kernel: whole MLP over one batch tile, weights VMEM-resident.
# ---------------------------------------------------------------------------
def _fused_mlp_kernel(x_ref, *refs, num_layers, out_pads):
    """refs = (w_0, ..., w_{L-1}, bias_pack, out)."""
    out_ref = refs[-1]
    b_ref = refs[-2]
    w_refs = refs[:num_layers]

    h = x_ref[...]                                    # (TB, F_pad) bf16
    for i in range(num_layers):
        n = out_pads[i]
        # MXU bf16 matmul, f32 accumulation.
        acc = jnp.dot(h, w_refs[i][...], preferred_element_type=jnp.float32)
        acc = acc + b_ref[i:i + 1, :n]                # static slice of the ref
        if i < num_layers - 1:                        # last_activation=False
            h = jnp.maximum(acc, 0.0).astype(jnp.bfloat16)
        else:
            h = acc
    out_ref[...] = h.astype(out_ref.dtype)


# ---------------------------------------------------------------------------
# K-tiled per-layer fallback (large layers / v7x 64 MiB VMEM).
# ---------------------------------------------------------------------------
def _linear_kernel(x_ref, w_ref, b_ref, o_ref, acc_ref, *, apply_relu):
    @pl.when(pl.program_id(2) == 0)
    def _():
        acc_ref[...] = jnp.zeros_like(acc_ref)

    acc_ref[...] += jnp.dot(x_ref[...], w_ref[...],
                            preferred_element_type=jnp.float32)

    @pl.when(pl.program_id(2) == pl.num_programs(2) - 1)
    def _():
        r = acc_ref[...] + b_ref[...]
        if apply_relu:
            r = jnp.maximum(r, 0.0)
        o_ref[...] = r.astype(o_ref.dtype)


def _pick_tile(dim, cap):
    """Largest multiple of 128 <= cap that divides dim (dim is a mult. of 128)."""
    t = min(dim, cap)
    while dim % t:
        t -= 128
    return t


def _linear_pallas(x_p, w_p, b_row, *, apply_relu, out_dtype, tm, vmem_cap):
    M, K = x_p.shape
    _, N = w_p.shape
    tk = _pick_tile(K, 512)
    tn = _pick_tile(N, 256)
    out_bytes = jnp.dtype(out_dtype).itemsize
    est = (2 * (tm * tk * 2 + tk * tn * 2 + tn * 4 + tm * tn * out_bytes)
           + tm * tn * 4 + (2 << 20))
    vmem_limit = int(min(max(est, 16 << 20), vmem_cap))
    return pl.pallas_call(
        functools.partial(_linear_kernel, apply_relu=apply_relu),
        out_shape=jax.ShapeDtypeStruct((M, N), out_dtype),
        grid=(M // tm, N // tn, K // tk),
        in_specs=[pl.BlockSpec((tm, tk), lambda i, j, k: (i, k)),
                  pl.BlockSpec((tk, tn), lambda i, j, k: (k, j)),
                  pl.BlockSpec((1, tn), lambda i, j, k: (0, j))],
        out_specs=pl.BlockSpec((tm, tn), lambda i, j, k: (i, j)),
        scratch_shapes=[pltpu.VMEM((tm, tn), jnp.float32)],
        compiler_params=pltpu.CompilerParams(
            dimension_semantics=("parallel", "parallel", "arbitrary"),
            vmem_limit_bytes=vmem_limit),
    )(x_p, w_p, b_row)


# ---------------------------------------------------------------------------
# Forward pass.
# ---------------------------------------------------------------------------
@functools.partial(jax.jit, static_argnames=("meta", "force_split"))
def mlp_forward(obs, w_ps, b_pack, *, meta, force_split=False):
    """obs: (B, ...) -> (B, out_dims[-1]) f32. w_ps/b_pack from prepare_mlp_params."""
    obs = jnp.asarray(obs, jnp.float32)
    B = obs.shape[0]
    x = obs.reshape(B, -1)                            # torch .flatten(1)
    if x.shape[1] != meta.in_dim:
        raise ValueError(f"flattened dim {x.shape[1]} != {meta.in_dim}")

    num_layers = len(w_ps)
    out_dims = meta.out_dims
    out_pads = tuple(int(w.shape[1]) for w in w_ps)
    F = meta.in_dim
    F_pad = int(w_ps[0].shape[0])
    out_pad_last = out_pads[-1]
    max_out_pad = int(b_pack.shape[1])

    vmem_cap = _vmem_capacity_bytes()
    budget = vmem_cap - (8 << 20)                     # headroom

    single_buf = _single_buffer_supported()
    weight_bytes = sum(int(w.size) * 2 for w in w_ps) + int(b_pack.size) * 4
    resident_bytes = weight_bytes if single_buf else 2 * weight_bytes

    # Per-batch-row VMEM: double-buffered x/out tiles + per-layer temporaries.
    per_row = (2 * (F_pad * 2 + out_pad_last * 4)
               + sum(p * 2 for p in out_pads) + max_out_pad * 4)

    # Batch tiling: bf16 vregs pack 16 sublanes -> round batch & TB to 16.
    B_pad16 = _round_up(B, 16)
    tb_budget = max((budget - resident_bytes - (2 << 20)) // max(per_row, 1), 0)
    TB_cap = max(16, min(512, B_pad16, (tb_budget // 16) * 16))
    steps = max(1, _cdiv(B_pad16, TB_cap))
    if steps < 2 and B_pad16 >= 32:
        steps = 2                                     # keep both v7x TCs busy
    TB = max(16, min(TB_cap, _round_up(_cdiv(B_pad16, steps), 16)))
    B_pad = _round_up(B_pad16, TB)

    use_fused = (not force_split) and (
        resident_bytes + TB * per_row + (2 << 20) <= budget)

    if use_fused:
        # Zero-pad + cast activations (padding is exact; sliced off below).
        x_p = jnp.zeros((B_pad, F_pad), jnp.bfloat16).at[:B, :F].set(
            x.astype(jnp.bfloat16))

        def _resident(shape):
            if single_buf:
                return pl.BlockSpec(shape, lambda i: (0, 0),
                                    pipeline_mode=pl.Buffered(1))
            return pl.BlockSpec(shape, lambda i: (0, 0))

        in_specs = [pl.BlockSpec((TB, F_pad), lambda i: (i, 0))]
        in_specs += [_resident(tuple(w.shape)) for w in w_ps]
        in_specs.append(_resident(tuple(b_pack.shape)))
        out_specs = pl.BlockSpec((TB, out_pad_last), lambda i: (i, 0))

        est = resident_bytes + TB * per_row + (2 << 20)
        vmem_limit = int(min(max(est, 16 << 20), vmem_cap))

        kernel = functools.partial(_fused_mlp_kernel, num_layers=num_layers,
                                   out_pads=out_pads)
        out_p = pl.pallas_call(
            kernel,
            out_shape=jax.ShapeDtypeStruct((B_pad, out_pad_last), jnp.float32),
            grid=(B_pad // TB,),
            in_specs=in_specs,
            out_specs=out_specs,
            compiler_params=pltpu.CompilerParams(
                dimension_semantics=("parallel",),
                vmem_limit_bytes=vmem_limit),
        )(x_p, *w_ps, b_pack)
        return out_p[:B, :out_dims[-1]]

    # K-tiled per-layer path: weights streamed through VMEM in (tk, tn) tiles,
    # f32 accumulator scratch, bias+ReLU fused into the last-k finalize.
    tm = min(256, _round_up(B, 16))
    M_pad = _round_up(B, tm)
    h = jnp.zeros((M_pad, F_pad), jnp.bfloat16).at[:B, :F].set(
        x.astype(jnp.bfloat16))
    for i in range(num_layers):
        last = i == num_layers - 1
        h = _linear_pallas(
            h, w_ps[i], b_pack[i:i + 1, :out_pads[i]],
            apply_relu=not last,
            out_dtype=jnp.float32 if last else jnp.bfloat16,
            tm=tm, vmem_cap=vmem_cap)
    return h[:B, :out_dims[-1]]


# ---------------------------------------------------------------------------
# Init + reference + demo.
# ---------------------------------------------------------------------------
def init_params(dims, key):
    """Deterministic scaled-normal init matching the Linear shapes in MLP."""
    weights, biases = [], []
    for k in range(len(dims) - 1):
        key, wk, bk = jax.random.split(key, 3)
        w = jax.random.normal(wk, (dims[k], dims[k + 1]), jnp.float32) / jnp.sqrt(dims[k])
        b = jax.random.normal(bk, (dims[k + 1],), jnp.float32) * 0.01
        weights.append(w)
        biases.append(b)
    return weights, biases


def mlp_reference(obs, weights, biases):
    """Plain-JAX reference with the same bf16-input / f32-accum math."""
    x = jnp.asarray(obs, jnp.float32).reshape(obs.shape[0], -1)
    n = len(weights)
    for i, (w, b) in enumerate(zip(weights, biases)):
        x = jnp.dot(x.astype(jnp.bfloat16), w.astype(jnp.bfloat16),
                    preferred_element_type=jnp.float32) + b
        if i < n - 1:
            x = jnp.maximum(x, 0.0)
    return x


if __name__ == "__main__":
    key = jax.random.PRNGKey(0)
    key, xk = jax.random.split(key)

    # NCHW input (B=2, C=4, H=16, W=16) -> flattened feature dim 1024.
    x = jax.random.normal(xk, (2, 4, 16, 16), jnp.float32)

    dims = [4 * 16 * 16, 64, 32, 16]                  # MLP(dims=[1024, 64, 32, 16])
    weights, biases = init_params(dims, key)

    # One-time parameter preparation (hoisted out of the per-call path).
    w_ps, b_pack, meta = prepare_mlp_params(weights, biases)

    ref = mlp_reference(x, weights, biases)

    # Fused (weights VMEM-resident) path.
    out = jax.block_until_ready(mlp_forward(x, w_ps, b_pack, meta=meta))
    assert out.shape == (2, dims[-1]), out.shape
    assert jnp.allclose(out, ref, atol=1e-2, rtol=1e-2), \
        float(jnp.max(jnp.abs(out - ref)))

    # Also exercise the K-tiled per-layer path (used automatically when the
    # weights are too large to keep VMEM-resident, e.g. v7x's 64 MiB VMEM).
    out_split = jax.block_until_ready(
        mlp_forward(x, w_ps, b_pack, meta=meta, force_split=True))
    assert jnp.allclose(out_split, ref, atol=1e-2, rtol=1e-2), \
        float(jnp.max(jnp.abs(out_split - ref)))

    print("KERNEL_OK")
</pallas_src>

<mosaic_0001>
module attributes {stable_mosaic.version = 11 : i64} {
  func.func @_probe_kernel(%arg0: i32, %arg1: memref<8x128xf32, #tpu.memory_space<vmem>>, %arg2: memref<8x128xf32, #tpu.memory_space<vmem>>) attributes {dimension_semantics = [#tpu.dimension_semantics<arbitrary>], iteration_bounds = array<i64: 2>, scalar_prefetch = 0 : i64, scratch_operands = 0 : i64, tpu.core_type = #tpu.core_type<tc>, window_params = [{pipeline_mode = #tpu.pipeline_mode<synchronous>, transform_indices = @transform_0, window_bounds = array<i64: 8, 128>}, {pipeline_mode = #tpu.pipeline_mode<synchronous>, transform_indices = @transform_1, window_bounds = array<i64: 8, 128>}]} {
    %c0 = arith.constant 0 : index
    %c0_0 = arith.constant 0 : index
    %0 = vector.load %arg1[%c0, %c0_0] : memref<8x128xf32, #tpu.memory_space<vmem>>, vector<8x128xf32>
    %cst = arith.constant 1.000000e+00 : f32
    %1 = vector.broadcast %cst : f32 to vector<8x128xf32>
    %2 = arith.addf %0, %1 : vector<8x128xf32>
    %c0_1 = arith.constant 0 : index
    %c0_2 = arith.constant 0 : index
    %3 = vector.load %arg2[%c0_1, %c0_2] : memref<8x128xf32, #tpu.memory_space<vmem>>, vector<8x128xf32>
    tpu.vector_store %arg2[%c0_1, %c0_2], %2 {strides = array<i32>} : memref<8x128xf32, #tpu.memory_space<vmem>>, vector<8x128xf32>,
    return
  }
  func.func @transform_0(%arg0: i32) -> (i32, i32) {
    %c0_i32 = arith.constant 0 : i32
    %c0_i32_0 = arith.constant 0 : i32
    %c0_i32_1 = arith.constant 0 : i32
    return %c0_i32, %c0_i32_0 : i32, i32
  }
  func.func @transform_1(%arg0: i32) -> (i32, i32) {
    %c0_i32 = arith.constant 0 : i32
    %c0_i32_0 = arith.constant 0 : i32
    %c0_i32_1 = arith.constant 0 : i32
    return %c0_i32, %c0_i32_0 : i32, i32
  }
}

module attributes {stable_mosaic.version = 11 : i64} {
  func.func @_fused_mlp_kernel(%arg0: i32, %arg1: memref<16x1024xbf16, #tpu.memory_space<vmem>>, %arg2: memref<1024x128xbf16, #tpu.memory_space<vmem>>, %arg3: memref<128x128xbf16, #tpu.memory_space<vmem>>, %arg4: memref<128x128xbf16, #tpu.memory_space<vmem>>, %arg5: memref<3x128xf32, #tpu.memory_space<vmem>>, %arg6: memref<16x128xf32, #tpu.memory_space<vmem>>) attributes {dimension_semantics = [#tpu.dimension_semantics<parallel>], iteration_bounds = array<i64: 1>, scalar_prefetch = 0 : i64, scratch_operands = 0 : i64, tpu.core_type = #tpu.core_type<tc>, window_params = [{transform_indices = @transform_0, window_bounds = array<i64: 16, 1024>}, {pipeline_mode = #tpu.pipeline_mode<synchronous>, transform_indices = @transform_1, window_bounds = array<i64: 1024, 128>}, {pipeline_mode = #tpu.pipeline_mode<synchronous>, transform_indices = @transform_2, window_bounds = array<i64: 128, 128>}, {pipeline_mode = #tpu.pipeline_mode<synchronous>, transform_indices = @transform_3, window_bounds = array<i64: 128, 128>}, {pipeline_mode = #tpu.pipeline_mode<synchronous>, transform_indices = @transform_4, window_bounds = array<i64: 3, 128>}, {transform_indices = @transform_5, window_bounds = array<i64: 16, 128>}]} {
    %c0 = arith.constant 0 : index
    %c0_0 = arith.constant 0 : index
    %0 = vector.load %arg1[%c0, %c0_0] : memref<16x1024xbf16, #tpu.memory_space<vmem>>, vector<16x1024xbf16>
    %c0_1 = arith.constant 0 : index
    %c0_2 = arith.constant 0 : index
    %1 = vector.load %arg2[%c0_1, %c0_2] : memref<1024x128xbf16, #tpu.memory_space<vmem>>, vector<1024x128xbf16>
    %cst = arith.constant dense<0.000000e+00> : vector<16x128xf32>
    %2 = tpu.matmul %0, %1, %cst {dimension_numbers = #tpu.dot_dimension_numbers<[1], [0], [0], [1], [0, 0, 1, 1], [], []>} : vector<16x1024xbf16>, vector<1024x128xbf16>, vector<16x128xf32> -> vector<16x128xf32>
    %c0_3 = arith.constant 0 : index
    %c0_4 = arith.constant 0 : index
    %3 = vector.load %arg5[%c0_3, %c0_4] : memref<3x128xf32, #tpu.memory_space<vmem>>, vector<1x128xf32>
    %4 = vector.broadcast %3 : vector<1x128xf32> to vector<16x128xf32>
    %5 = arith.addf %2, %4 : vector<16x128xf32>
    %cst_5 = arith.constant 0.000000e+00 : f32
    %6 = vector.broadcast %cst_5 : f32 to vector<16x128xf32>
    %7 = arith.maximumf %5, %6 : vector<16x128xf32>
    %8 = arith.truncf %7 : vector<16x128xf32> to vector<16x128xbf16>
    %c0_6 = arith.constant 0 : index
    %c0_7 = arith.constant 0 : index
    %9 = vector.load %arg3[%c0_6, %c0_7] : memref<128x128xbf16, #tpu.memory_space<vmem>>, vector<128x128xbf16>
    %cst_8 = arith.constant dense<0.000000e+00> : vector<16x128xf32>
    %10 = tpu.matmul %8, %9, %cst_8 {dimension_numbers = #tpu.dot_dimension_numbers<[1], [0], [0], [1], [0, 0, 1, 1], [], []>} : vector<16x128xbf16>, vector<128x128xbf16>, vector<16x128xf32> -> vector<16x128xf32>
    %c1 = arith.constant 1 : index
    %c0_9 = arith.constant 0 : index
    %11 = vector.load %arg5[%c1, %c0_9] : memref<3x128xf32, #tpu.memory_space<vmem>>, vector<1x128xf32>
    %12 = vector.broadcast %11 : vector<1x128xf32> to vector<16x128xf32>
    %13 = arith.addf %10, %12 : vector<16x128xf32>
    %cst_10 = arith.constant 0.000000e+00 : f32
    %14 = vector.broadcast %cst_10 : f32 to vector<16x128xf32>
    %15 = arith.maximumf %13, %14 : vector<16x128xf32>
    %16 = arith.truncf %15 : vector<16x128xf32> to vector<16x128xbf16>
    %c0_11 = arith.constant 0 : index
    %c0_12 = arith.constant 0 : index
    %17 = vector.load %arg4[%c0_11, %c0_12] : memref<128x128xbf16, #tpu.memory_space<vmem>>, vector<128x128xbf16>
    %cst_13 = arith.constant dense<0.000000e+00> : vector<16x128xf32>
    %18 = tpu.matmul %16, %17, %cst_13 {dimension_numbers = #tpu.dot_dimension_numbers<[1], [0], [0], [1], [0, 0, 1, 1], [], []>} : vector<16x128xbf16>, vector<128x128xbf16>, vector<16x128xf32> -> vector<16x128xf32>
    %c2 = arith.constant 2 : index
    %c0_14 = arith.constant 0 : index
    %19 = vector.load %arg5[%c2, %c0_14] : memref<3x128xf32, #tpu.memory_space<vmem>>, vector<1x128xf32>
    %20 = vector.broadcast %19 : vector<1x128xf32> to vector<16x128xf32>
    %21 = arith.addf %18, %20 : vector<16x128xf32>
    %c0_15 = arith.constant 0 : index
    %c0_16 = arith.constant 0 : index
    %22 = vector.load %arg6[%c0_15, %c0_16] : memref<16x128xf32, #tpu.memory_space<vmem>>, vector<16x128xf32>
    tpu.vector_store %arg6[%c0_15, %c0_16], %21 {strides = array<i32>} : memref<16x128xf32, #tpu.memory_space<vmem>>, vector<16x128xf32>,
    return
  }
  func.func @transform_0(%arg0: i32) -> (i32, i32) {
    %c0_i32 = arith.constant 0 : i32
    %c0_i32_0 = arith.constant 0 : i32
    return %arg0, %c0_i32 : i32, i32
  }
  func.func @transform_1(%arg0: i32) -> (i32, i32) {
    %c0_i32 = arith.constant 0 : i32
    %c0_i32_0 = arith.constant 0 : i32
    %c0_i32_1 = arith.constant 0 : i32
    return %c0_i32, %c0_i32_0 : i32, i32
  }
  func.func @transform_2(%arg0: i32) -> (i32, i32) {
    %c0_i32 = arith.constant 0 : i32
    %c0_i32_0 = arith.constant 0 : i32
    %c0_i32_1 = arith.constant 0 : i32
    return %c0_i32, %c0_i32_0 : i32, i32
  }
  func.func @transform_3(%arg0: i32) -> (i32, i32) {
    %c0_i32 = arith.constant 0 : i32
    %c0_i32_0 = arith.constant 0 : i32
    %c0_i32_1 = arith.constant 0 : i32
    return %c0_i32, %c0_i32_0 : i32, i32
  }
  func.func @transform_4(%arg0: i32) -> (i32, i32) {
    %c0_i32 = arith.constant 0 : i32
    %c0_i32_0 = arith.constant 0 : i32
    %c0_i32_1 = arith.constant 0 : i32
    return %c0_i32, %c0_i32_0 : i32, i32
  }
  func.func @transform_5(%arg0: i32) -> (i32, i32) {
    %c0_i32 = arith.constant 0 : i32
    %c0_i32_0 = arith.constant 0 : i32
    return %arg0, %c0_i32 : i32, i32
  }
}

</mosaic_0001>

<llo_original>
// kernel: tpu_custom_call.1
$region0: #{tpu_custom_call.1}
  #allocation0 [shape = 'u32[]', space=smem, size = 0x4, offset = 0x4, fixed_abs, tag = 'smem constant byte address 0x4 - core index']
  #allocation1 [shape = 'u32[72,128]{1,0:T(1,128)}', space=vmem, size = 0x9000, scoped, tag = 'internal scratch']
  %s0 = inlined_call_operand.hbm [shape: f32[8,128], index: 0, kind: input, shape index: {}]
  %s1 = inlined_call_operand.hbm [shape: f32[8,128], index: 1, kind: output, shape index: {}]
  %s2 = sld [smem:[#allocation0]]
  $region41: #{tpu_custom_call.1} parent=0
    _
  %s4 = ssub.s32 1, %s2
  %s5 = scalar_select 0, %s4, %s2
  $region1: #{tpu_custom_call.1} parent=0
    #allocation2 [shape = 'u8[4096]{0}', space=vmem, size = 0x1000, scoped, tag = 'input window, operand 0, single buffered']
    #allocation3 [shape = 's32[2]{0}', space=sflag, size = 0x8, scoped, tag = 'scoped memory for tpu_custom_call.1']
    #allocation4 [shape = 's32[2]{0}', space=sflag, size = 0x8, scoped, tag = 'scoped memory for tpu_custom_call.1']
    #allocation5 [shape = 'u8[4096]{0}', space=vmem, size = 0x1000, scoped, tag = 'output window, operand 0, single buffered']
    %6 = vsyncpa [#allocation3], 0
    %7 = vsyncpa [#allocation4], 0
    loop: start=0, step=1, limit=4
    $region2: #{tpu_custom_call.1} parent=1 // loop_pre_header
      _
    $region3: #{tpu_custom_call.1} parent=1 // loop_header
      %s9 = sphi 0, %s13
      %p10 = scmp.ge.s32.totalorder %s9, 4
      %s17 = sphi 0, %s17
      %s19 = sphi 0, %s17
      %s20 = sphi 0, %s19
      %s34 = sphi 0, %s20
      %s38 = sphi 0, %s38
      %s40 = sphi 0, %s38
      %s41 = sphi 0, %s40
      %s55 = sphi 0, %s41
    $region4: #{tpu_custom_call.1} parent=1 // loop_header_branch
      %12 = sbr.rel (%p10) target = $region8
    $region5: #{tpu_custom_call.1} parent=1 // loop_body
      %s14 = ssub.s32 %s9, 1
      %s15 = ssub.s32 %s9, 2
      %s16 = sadd.s32 %s9, 1
      %s18 = sadd.s32 %s17, 1
      %p21 = scmp.eq.s32.totalorder %s9, 1
      %p22 = scmp.ne.s32.totalorder %s17, %s19
      %p23 = scmp.eq.s32.totalorder %s9, 0
      %p24 = por %p22, %p23
      %p25 = scmp.ne.s32.totalorder %s17, %s19
      %p26 = scmp.eq.s32.totalorder %s14, 1
      %p27 = por %p25, %p26
      %p28 = scmp.ne.s32.totalorder %s19, %s20
      %p29 = scmp.eq.s32.totalorder %s14, 0
      %p30 = por %p28, %p29
      %p31 = scmp.ne.s32.totalorder %s19, %s20
      %p32 = scmp.eq.s32.totalorder %s15, 1
      %p33 = por %p31, %p32
      %p35 = scmp.ne.s32.totalorder %s20, %s34
      %p36 = scmp.eq.s32.totalorder %s15, 0
      %p37 = por %p35, %p36
      %s39 = sadd.s32 %s38, 1
      %p42 = scmp.eq.s32.totalorder %s9, 1
      %p43 = scmp.ne.s32.totalorder %s38, %s40
      %p44 = scmp.eq.s32.totalorder %s9, 0
      %p45 = por %p43, %p44
      %p46 = scmp.ne.s32.totalorder %s38, %s40
      %p47 = scmp.eq.s32.totalorder %s14, 1
      %p48 = por %p46, %p47
      %p49 = scmp.ne.s32.totalorder %s40, %s41
      %p50 = scmp.eq.s32.totalorder %s14, 0
      %p51 = por %p49, %p50
      %p52 = scmp.ne.s32.totalorder %s40, %s41
      %p53 = scmp.eq.s32.totalorder %s15, 1
      %p54 = por %p52, %p53
      %p56 = scmp.ne.s32.totalorder %s41, %s55
      %p57 = scmp.eq.s32.totalorder %s15, 0
      %p58 = por %p56, %p57
      %p59 = scmp.le.s32.totalorder 1, %s9
      %p60 = scmp.lt.s32.totalorder %s9, 3
      %p61 = pnand %p59, %p60
      %p62 = pneg %p61
      // Predicated region
      $region9: #{tpu_custom_call.1} parent=5 // pred_check
        _
      $region10: #{tpu_custom_call.1} parent=5 // pred_check_branch
        %64 = sbr.rel (%p61) target = $region12
      $region11: #{tpu_custom_call.1} parent=5 // pred_region
        %s65 = ssub.s32 %s9, 1
        // Predicated region
        $region13: #{tpu_custom_call.1} parent=11 // pred_check
          %p66 = pneg %p30
        $region14: #{tpu_custom_call.1} parent=11 // pred_check_branch
          %68 = sbr.rel (%p66) target = $region16
        $region15: #{tpu_custom_call.1} parent=11 // pred_region
          %70 = vsyncadd [#allocation3], 0
          %s72 = sshll.u32 %s0, 4
          %s73 = int_to_ptr.hbm [resolvable:$true] %s72
          %s74 = sshll.u32 [#allocation2], 4
          %s75 = int_to_ptr.vmem [resolvable:$true] %s74
          %77 = dma.hbm_to_vmem [thread:$0]  %s73, 128, %s75, [#allocation3]
        $region16: #{tpu_custom_call.1} parent=11 // pred_fallthru
          _
      $region12: #{tpu_custom_call.1} parent=5 // pred_fallthru
        _
      %p78 = scmp.lt.s32.totalorder %s9, 2
      // Predicated region
      $region17: #{tpu_custom_call.1} parent=5 // pred_check
        %p79 = pneg %p78
      $region18: #{tpu_custom_call.1} parent=5 // pred_check_branch
        %81 = sbr.rel (%p79) target = $region20
      $region19: #{tpu_custom_call.1} parent=5 // pred_region
        _
      $region20: #{tpu_custom_call.1} parent=5 // pred_fallthru
        _
      %p82 = scmp.le.s32.totalorder 1, %s9
      %p83 = scmp.lt.s32.totalorder %s9, 3
      %p84 = pnand %p82, %p83
      %p85 = pneg %p84
      // Predicated region
      $region21: #{tpu_custom_call.1} parent=5 // pred_check
        _
      $region22: #{tpu_custom_call.1} parent=5 // pred_check_branch
        %87 = sbr.rel (%p84) target = $region24
      $region23: #{tpu_custom_call.1} parent=5 // pred_region
        %s88 = ssub.s32 %s9, 1
        // Predicated region
        $region25: #{tpu_custom_call.1} parent=23 // pred_check
          %p89 = pneg %p30
        $region26: #{tpu_custom_call.1} parent=23 // pred_check_branch
          %91 = sbr.rel (%p89) target = $region28
        $region27: #{tpu_custom_call.1} parent=23 // pred_region
          %93 = dma.done [#allocation3], 128
        $region28: #{tpu_custom_call.1} parent=23 // pred_fallthru
          _
        %p94 = pneg %p30
        %p95 = pneg %p27
        %p96 = pneg %p51
        %p97 = pneg %p48
        %v98 = vld [vmem:[#allocation2] sm:$0xff]
        %v99 = vadd.f32 %v98, 1.0
        %100 = vst [vmem:[#allocation5] sm:$0xff] %v99
        // Predicated region
        $region29: #{tpu_custom_call.1} parent=23 // pred_check
          %p101 = pneg %p48
        $region30: #{tpu_custom_call.1} parent=23 // pred_check_branch
          %103 = sbr.rel (%p101) target = $region32
        $region31: #{tpu_custom_call.1} parent=23 // pred_region
          %105 = vsyncadd [#allocation4], 0
          %s107 = sshll.u32 [#allocation5], 4
          %s108 = int_to_ptr.vmem [resolvable:$true] %s107
          %s109 = sshll.u32 %s1, 4
          %s110 = int_to_ptr.hbm [resolvable:$true] %s109
          %112 = dma.vmem_to_hbm [thread:$0]  %s108, 128, %s110, [#allocation4]
        $region32: #{tpu_custom_call.1} parent=23 // pred_fallthru
          _
        // Predicated region
        $region33: #{tpu_custom_call.1} parent=23 // pred_check
          %p113 = pneg %p48
        $region34: #{tpu_custom_call.1} parent=23 // pred_check_branch
          %115 = sbr.rel (%p113) target = $region36
        $region35: #{tpu_custom_call.1} parent=23 // pred_region
          %117 = dma.done [#allocation4], 128
        $region36: #{tpu_custom_call.1} parent=23 // pred_fallthru
          _
      $region24: #{tpu_custom_call.1} parent=5 // pred_fallthru
        _
      %p118 = scmp.le.s32.totalorder 2, %s9
      // Predicated region
      $region37: #{tpu_custom_call.1} parent=5 // pred_check
        %p119 = pneg %p118
      $region38: #{tpu_custom_call.1} parent=5 // pred_check_branch
        %121 = sbr.rel (%p119) target = $region40
      $region39: #{tpu_custom_call.1} parent=5 // pred_region
        %s122 = ssub.s32 %s9, 2
      $region40: #{tpu_custom_call.1} parent=5 // pred_fallthru
        _
    $region6: #{tpu_custom_call.1} parent=1 // loop_footer
      %s13 = sadd.s32 1, %s9
    $region7: #{tpu_custom_call.1} parent=1 // loop_footer_branch
      %8 = sbr.rel target = $region3
    $region8: #{tpu_custom_call.1} parent=1 // loop_exit
      _
    %123 = vsyncpa [#allocation3], 1
    %s124 = scalar_lea.sflag [#allocation3], 1
    %125 = vsyncpa %s124, 1
    %126 = vsyncpa [#allocation4], 1
    %s127 = scalar_lea.sflag [#allocation4], 1
    %128 = vsyncpa %s127, 1

// kernel: mlp_forward.1
$region0: #{mlp_forward.1}
  #allocation0 [shape = 'u32[]', space=smem, size = 0x4, offset = 0x4, fixed_abs, tag = 'smem constant byte address 0x4 - core index']
  #allocation1 [shape = 'u32[72,128]{1,0:T(1,128)}', space=vmem, size = 0x9000, scoped, tag = 'internal scratch']
  %s0 = inlined_call_operand.vmem [shape: bf16[16,1024], index: 0, kind: input, shape index: {}]
  %s1 = inlined_call_operand.hbm [shape: bf16[1024,128], index: 1, kind: input, shape index: {}]
  %s2 = inlined_call_operand.vmem [shape: bf16[128,128], index: 2, kind: input, shape index: {}]
  %s3 = inlined_call_operand.vmem [shape: bf16[128,128], index: 3, kind: input, shape index: {}]
  %s4 = inlined_call_operand.vmem [shape: f32[3,128], index: 4, kind: input, shape index: {}]
  %s5 = inlined_call_operand.vmem [shape: f32[16,128], index: 5, kind: output, shape index: {}]
  %s6 = sld [smem:[#allocation0]]
  $region34: #{mlp_forward.1} parent=0
    _
  %s8 = ssub.s32 1, %s6
  %s9 = scalar_select 0, %s8, %s6
  $region1: #{mlp_forward.1} parent=0
    #allocation2 [shape = 'u8[262144]{0}', space=vmem, size = 0x40000, scoped, tag = 'input window, operand 1, single buffered']
    #allocation3 [shape = 's32[1]{0}', space=sflag, size = 0x4, scoped, tag = 'scoped memory for mlp_forward.1']
    %10 = vsyncpa [#allocation3], 0
    // Predicated region
    $region2: #{mlp_forward.1} parent=1 // pred_check
      _
    $region3: #{mlp_forward.1} parent=1 // pred_check_branch
      %12 = sbr.rel (0) target = $region5
    $region4: #{mlp_forward.1} parent=1 // pred_region
      _
    $region5: #{mlp_forward.1} parent=1 // pred_fallthru
      _
    // Predicated region
    $region6: #{mlp_forward.1} parent=1 // pred_check
      _
    $region7: #{mlp_forward.1} parent=1 // pred_check_branch
      %14 = sbr.rel (0) target = $region9
    $region8: #{mlp_forward.1} parent=1 // pred_region
      %16 = vsyncadd [#allocation3], 0
      %s17 = sshll.u32 %s1, 4
      %s18 = int_to_ptr.hbm [resolvable:$true] %s17
      %s19 = sshll.u32 [#allocation2], 4
      %s20 = int_to_ptr.vmem [resolvable:$true] %s19
      %25 = dma.hbm_to_vmem [thread:$0]  %s18, 8192, %s20, [#allocation3], 64, 64, 4
    $region9: #{mlp_forward.1} parent=1 // pred_fallthru
      _
    // Predicated region
    $region10: #{mlp_forward.1} parent=1 // pred_check
      _
    $region11: #{mlp_forward.1} parent=1 // pred_check_branch
      %27 = sbr.rel (0) target = $region13
    $region12: #{mlp_forward.1} parent=1 // pred_region
      _
    $region13: #{mlp_forward.1} parent=1 // pred_fallthru
      _
    // Predicated region
    $region14: #{mlp_forward.1} parent=1 // pred_check
      _
    $region15: #{mlp_forward.1} parent=1 // pred_check_branch
      %29 = sbr.rel (0) target = $region17
    $region16: #{mlp_forward.1} parent=1 // pred_region
      _
    $region17: #{mlp_forward.1} parent=1 // pred_fallthru
      _
    // Predicated region
    $region18: #{mlp_forward.1} parent=1 // pred_check
      _
    $region19: #{mlp_forward.1} parent=1 // pred_check_branch
      %31 = sbr.rel (0) target = $region21
    $region20: #{mlp_forward.1} parent=1 // pred_region
      _
    $region21: #{mlp_forward.1} parent=1 // pred_fallthru
      _
    // Predicated region
    $region22: #{mlp_forward.1} parent=1 // pred_check
      _
    $region23: #{mlp_forward.1} parent=1 // pred_check_branch
      %33 = sbr.rel (0) target = $region25
    $region24: #{mlp_forward.1} parent=1 // pred_region
      %35 = dma.done [#allocation3], 8192
    $region25: #{mlp_forward.1} parent=1 // pred_fallthru
      _
    %v36 = vld [vmem:[%s0] sm:$0xff]
    %v37 = vld [vmem:[%s0 + $0x8] sm:$0xff]
    %v38 = vld [vmem:[%s0 + $0x10] sm:$0xff]
    %v39 = vld [vmem:[%s0 + $0x18] sm:$0xff]
    %v40 = vld [vmem:[%s0 + $0x20] sm:$0xff]
    %v41 = vld [vmem:[%s0 + $0x28] sm:$0xff]
    %v42 = vld [vmem:[%s0 + $0x30] sm:$0xff]
    %v43 = vld [vmem:[%s0 + $0x38] sm:$0xff]
    %v44 = vld [vmem:[#allocation2] sm:$0xf]
    %v45 = vld [vmem:[#allocation2 + $0x4] sm:$0xf]
    %v46 = vld [vmem:[#allocation2 + $0x8] sm:$0xf]
    %v47 = vld [vmem:[#allocation2 + $0xc] sm:$0xf]
    %v48 = vld [vmem:[#allocation2 + $0x10] sm:$0xf]
    %v49 = vld [vmem:[#allocation2 + $0x14] sm:$0xf]
    %v50 = vld [vmem:[#allocation2 + $0x18] sm:$0xf]
    %v51 = vld [vmem:[#allocation2 + $0x1c] sm:$0xf]
    %v52 = vld [vmem:[#allocation2 + $0x20] sm:$0xf]
    %v53 = vld [vmem:[#allocation2 + $0x24] sm:$0xf]
    %v54 = vld [vmem:[#allocation2 + $0x28] sm:$0xf]
    %v55 = vld [vmem:[#allocation2 + $0x2c] sm:$0xf]
    %v56 = vld [vmem:[#allocation2 + $0x30] sm:$0xf]
    %v57 = vld [vmem:[#allocation2 + $0x34] sm:$0xf]
    %v58 = vld [vmem:[#allocation2 + $0x38] sm:$0xf]
    %v59 = vld [vmem:[#allocation2 + $0x3c] sm:$0xf]
    %v60 = vld [vmem:[#allocation2 + $0x40] sm:$0xf]
    %v61 = vld [vmem:[#allocation2 + $0x44] sm:$0xf]
    %v62 = vld [vmem:[#allocation2 + $0x48] sm:$0xf]
    %v63 = vld [vmem:[#allocation2 + $0x4c] sm:$0xf]
    %v64 = vld [vmem:[#allocation2 + $0x50] sm:$0xf]
    %v65 = vld [vmem:[#allocation2 + $0x54] sm:$0xf]
    %v66 = vld [vmem:[#allocation2 + $0x58] sm:$0xf]
    %v67 = vld [vmem:[#allocation2 + $0x5c] sm:$0xf]
    %v68 = vld [vmem:[#allocation2 + $0x60] sm:$0xf]
    %v69 = vld [vmem:[#allocation2 + $0x64] sm:$0xf]
    %v70 = vld [vmem:[#allocation2 + $0x68] sm:$0xf]
    %v71 = vld [vmem:[#allocation2 + $0x6c] sm:$0xf]
    %v72 = vld [vmem:[#allocation2 + $0x70] sm:$0xf]
    %v73 = vld [vmem:[#allocation2 + $0x74] sm:$0xf]
    %v74 = vld [vmem:[#allocation2 + $0x78] sm:$0xf]
    %v75 = vld [vmem:[#allocation2 + $0x7c] sm:$0xf]
    %v76 = vld [vmem:[#allocation2 + $0x80] sm:$0xf]
    %v77 = vld [vmem:[#allocation2 + $0x84] sm:$0xf]
    %v78 = vld [vmem:[#allocation2 + $0x88] sm:$0xf]
    %v79 = vld [vmem:[#allocation2 + $0x8c] sm:$0xf]
    %v80 = vld [vmem:[#allocation2 + $0x90] sm:$0xf]
    %v81 = vld [vmem:[#allocation2 + $0x94] sm:$0xf]
    %v82 = vld [vmem:[#allocation2 + $0x98] sm:$0xf]
    %v83 = vld [vmem:[#allocation2 + $0x9c] sm:$0xf]
    %v84 = vld [vmem:[#allocation2 + $0xa0] sm:$0xf]
    %v85 = vld [vmem:[#allocation2 + $0xa4] sm:$0xf]
    %v86 = vld [vmem:[#allocation2 + $0xa8] sm:$0xf]
    %v87 = vld [vmem:[#allocation2 + $0xac] sm:$0xf]
    %v88 = vld [vmem:[#allocation2 + $0xb0] sm:$0xf]
    %v89 = vld [vmem:[#allocation2 + $0xb4] sm:$0xf]
    %v90 = vld [vmem:[#allocation2 + $0xb8] sm:$0xf]
    %v91 = vld [vmem:[#allocation2 + $0xbc] sm:$0xf]
    %v92 = vld [vmem:[#allocation2 + $0xc0] sm:$0xf]
    %v93 = vld [vmem:[#allocation2 + $0xc4] sm:$0xf]
    %v94 = vld [vmem:[#allocation2 + $0xc8] sm:$0xf]
    %v95 = vld [vmem:[#allocation2 + $0xcc] sm:$0xf]
    %v96 = vld [vmem:[#allocation2 + $0xd0] sm:$0xf]
    %v97 = vld [vmem:[#allocation2 + $0xd4] sm:$0xf]
    %v98 = vld [vmem:[#allocation2 + $0xd8] sm:$0xf]
    %v99 = vld [vmem:[#allocation2 + $0xdc] sm:$0xf]
    %v100 = vld [vmem:[#allocation2 + $0xe0] sm:$0xf]
    %v101 = vld [vmem:[#allocation2 + $0xe4] sm:$0xf]
    %v102 = vld [vmem:[#allocation2 + $0xe8] sm:$0xf]
    %v103 = vld [vmem:[#allocation2 + $0xec] sm:$0xf]
    %v104 = vld [vmem:[#allocation2 + $0xf0] sm:$0xf]
    %v105 = vld [vmem:[#allocation2 + $0xf4] sm:$0xf]
    %v106 = vld [vmem:[#allocation2 + $0xf8] sm:$0xf]
    %v107 = vld [vmem:[#allocation2 + $0xfc] sm:$0xf]
    %v108 = vld [vmem:[#allocation2 + $0x100] sm:$0xf]
    %v109 = vld [vmem:[#allocation2 + $0x104] sm:$0xf]
    %v110 = vld [vmem:[#allocation2 + $0x108] sm:$0xf]
    %v111 = vld [vmem:[#allocation2 + $0x10c] sm:$0xf]
    %v112 = vld [vmem:[#allocation2 + $0x110] sm:$0xf]
    %v113 = vld [vmem:[#allocation2 + $0x114] sm:$0xf]
    %v114 = vld [vmem:[#allocation2 + $0x118] sm:$0xf]
    %v115 = vld [vmem:[#allocation2 + $0x11c] sm:$0xf]
    %v116 = vld [vmem:[#allocation2 + $0x120] sm:$0xf]
    %v117 = vld [vmem:[#allocation2 + $0x124] sm:$0xf]
    %v118 = vld [vmem:[#allocation2 + $0x128] sm:$0xf]
    %v119 = vld [vmem:[#allocation2 + $0x12c] sm:$0xf]
    %v120 = vld [vmem:[#allocation2 + $0x130] sm:$0xf]
    %v121 = vld [vmem:[#allocation2 + $0x134] sm:$0xf]
    %v122 = vld [vmem:[#allocation2 + $0x138] sm:$0xf]
    %v123 = vld [vmem:[#allocation2 + $0x13c] sm:$0xf]
    %v124 = vld [vmem:[#allocation2 + $0x140] sm:$0xf]
    %v125 = vld [vmem:[#allocation2 + $0x144] sm:$0xf]
    %v126 = vld [vmem:[#allocation2 + $0x148] sm:$0xf]
    %v127 = vld [vmem:[#allocation2 + $0x14c] sm:$0xf]
    %v128 = vld [vmem:[#allocation2 + $0x150] sm:$0xf]
    %v129 = vld [vmem:[#allocation2 + $0x154] sm:$0xf]
    %v130 = vld [vmem:[#allocation2 + $0x158] sm:$0xf]
    %v131 = vld [vmem:[#allocation2 + $0x15c] sm:$0xf]
    %v132 = vld [vmem:[#allocation2 + $0x160] sm:$0xf]
    %v133 = vld [vmem:[#allocation2 + $0x164] sm:$0xf]
    %v134 = vld [vmem:[#allocation2 + $0x168] sm:$0xf]
    %v135 = vld [vmem:[#allocation2 + $0x16c] sm:$0xf]
    %v136 = vld [vmem:[#allocation2 + $0x170] sm:$0xf]
    %v137 = vld [vmem:[#allocation2 + $0x174] sm:$0xf]
    %v138 = vld [vmem:[#allocation2 + $0x178] sm:$0xf]
    %v139 = vld [vmem:[#allocation2 + $0x17c] sm:$0xf]
    %v140 = vld [vmem:[#allocation2 + $0x180] sm:$0xf]
    %v141 = vld [vmem:[#allocation2 + $0x184] sm:$0xf]
    %v142 = vld [vmem:[#allocation2 + $0x188] sm:$0xf]
    %v143 = vld [vmem:[#allocation2 + $0x18c] sm:$0xf]
    %v144 = vld [vmem:[#allocation2 + $0x190] sm:$0xf]
    %v145 = vld [vmem:[#allocation2 + $0x194] sm:$0xf]
    %v146 = vld [vmem:[#allocation2 + $0x198] sm:$0xf]
    %v147 = vld [vmem:[#allocation2 + $0x19c] sm:$0xf]
    %v148 = vld [vmem:[#allocation2 + $0x1a0] sm:$0xf]
    %v149 = vld [vmem:[#allocation2 + $0x1a4] sm:$0xf]
    %v150 = vld [vmem:[#allocation2 + $0x1a8] sm:$0xf]
    %v151 = vld [vmem:[#allocation2 + $0x1ac] sm:$0xf]
    %v152 = vld [vmem:[#allocation2 + $0x1b0] sm:$0xf]
    %v153 = vld [vmem:[#allocation2 + $0x1b4] sm:$0xf]
    %v154 = vld [vmem:[#allocation2 + $0x1b8] sm:$0xf]
    %v155 = vld [vmem:[#allocation2 + $0x1bc] sm:$0xf]
    %v156 = vld [vmem:[#allocation2 + $0x1c0] sm:$0xf]
    %v157 = vld [vmem:[#allocation2 + $0x1c4] sm:$0xf]
    %v158 = vld [vmem:[#allocation2 + $0x1c8] sm:$0xf]
    %v159 = vld [vmem:[#allocation2 + $0x1cc] sm:$0xf]
    %v160 = vld [vmem:[#allocation2 + $0x1d0] sm:$0xf]
    %v161 = vld [vmem:[#allocation2 + $0x1d4] sm:$0xf]
    %v162 = vld [vmem:[#allocation2 + $0x1d8] sm:$0xf]
    %v163 = vld [vmem:[#allocation2 + $0x1dc] sm:$0xf]
    %v164 = vld [vmem:[#allocation2 + $0x1e0] sm:$0xf]
    %v165 = vld [vmem:[#allocation2 + $0x1e4] sm:$0xf]
    %v166 = vld [vmem:[#allocation2 + $0x1e8] sm:$0xf]
    %v167 = vld [vmem:[#allocation2 + $0x1ec] sm:$0xf]
    %v168 = vld [vmem:[#allocation2 + $0x1f0] sm:$0xf]
    %v169 = vld [vmem:[#allocation2 + $0x1f4] sm:$0xf]
    %v170 = vld [vmem:[#allocation2 + $0x1f8] sm:$0xf]
    %v171 = vld [vmem:[#allocation2 + $0x1fc] sm:$0xf]
    %v172 = vld [vmem:[%s4] sm:$0x1]
    %v173 = vperm.slane %v172, 0
    %v182 = vunpack.c.l.b16 %v36
    %v183 = vunpack.c.h.b16 %v36
    %v184 = vunpack.c.l.b16 %v37
    %v185 = vunpack.c.h.b16 %v37
    %v186 = vunpack.c.l.b16 %v38
    %v187 = vunpack.c.h.b16 %v38
    %v188 = vunpack.c.l.b16 %v39
    %v189 = vunpack.c.h.b16 %v39
    %v190 = vunpack.c.l.b16 %v40
    %v191 = vunpack.c.h.b16 %v40
    %v192 = vunpack.c.l.b16 %v41
    %v193 = vunpack.c.h.b16 %v41
    %v194 = vunpack.c.l.b16 %v42
    %v195 = vunpack.c.h.b16 %v42
    %v196 = vunpack.c.l.b16 %v43
    %v197 = vunpack.c.h.b16 %v43
    %v198 = vpack.c.b16 %v190, %v182
    %v199 = vpack.c.b16 %v191, %v183
    %v200 = vpack.c.b16 %v192, %v184
    %v201 = vpack.c.b16 %v193, %v185
    %v202 = vpack.c.b16 %v194, %v186
    %v203 = vpack.c.b16 %v195, %v187
    %v204 = vpack.c.b16 %v196, %v188
    %v205 = vpack.c.b16 %v197, %v189
    %v342 = vunpack.c.l.b16 %v44
    %v343 = vunpack.c.l.b16 %v45
    %v344 = vunpack.c.l.b16 %v46
    %v345 = vunpack.c.l.b16 %v47
    %v346 = vunpack.c.l.b16 %v48
    %v347 = vunpack.c.l.b16 %v49
    %v348 = vunpack.c.l.b16 %v50
    %v349 = vunpack.c.l.b16 %v51
    %v350 = vunpack.c.l.b16 %v52
    %v351 = vunpack.c.l.b16 %v53
    %v352 = vunpack.c.l.b16 %v54
    %v353 = vunpack.c.l.b16 %v55
    %v354 = vunpack.c.l.b16 %v56
    %v355 = vunpack.c.l.b16 %v57
    %v356 = vunpack.c.l.b16 %v58
    %v357 = vunpack.c.l.b16 %v59
    %v358 = vunpack.c.l.b16 %v60
    %v359 = vunpack.c.l.b16 %v61
    %v360 = vunpack.c.l.b16 %v62
    %v361 = vunpack.c.l.b16 %v63
    %v362 = vunpack.c.l.b16 %v64
    %v363 = vunpack.c.l.b16 %v65
    %v364 = vunpack.c.l.b16 %v66
    %v365 = vunpack.c.l.b16 %v67
    %v366 = vunpack.c.l.b16 %v68
    %v367 = vunpack.c.l.b16 %v69
    %v368 = vunpack.c.l.b16 %v70
    %v369 = vunpack.c.l.b16 %v71
    %v370 = vunpack.c.l.b16 %v72
    %v371 = vunpack.c.l.b16 %v73
    %v372 = vunpack.c.l.b16 %v74
    %v373 = vunpack.c.l.b16 %v75
    %v374 = vunpack.c.l.b16 %v76
    %v375 = vunpack.c.l.b16 %v77
    %v376 = vunpack.c.l.b16 %v78
    %v377 = vunpack.c.l.b16 %v79
    %v378 = vunpack.c.l.b16 %v80
    %v379 = vunpack.c.l.b16 %v81
    %v380 = vunpack.c.l.b16 %v82
    %v381 = vunpack.c.l.b16 %v83
    %v382 = vunpack.c.l.b16 %v84
    %v383 = vunpack.c.l.b16 %v85
    %v384 = vunpack.c.l.b16 %v86
    %v385 = vunpack.c.l.b16 %v87
    %v386 = vunpack.c.l.b16 %v88
    %v387 = vunpack.c.l.b16 %v89
    %v388 = vunpack.c.l.b16 %v90
    %v389 = vunpack.c.l.b16 %v91
    %v390 = vunpack.c.l.b16 %v92
    %v391 = vunpack.c.l.b16 %v93
    %v392 = vunpack.c.l.b16 %v94
    %v393 = vunpack.c.l.b16 %v95
    %v394 = vunpack.c.l.b16 %v96
    %v395 = vunpack.c.l.b16 %v97
    %v396 = vunpack.c.l.b16 %v98
    %v397 = vunpack.c.l.b16 %v99
    %v398 = vunpack.c.l.b16 %v100
    %v399 = vunpack.c.l.b16 %v101
    %v400 = vunpack.c.l.b16 %v102
    %v401 = vunpack.c.l.b16 %v103
    %v402 = vunpack.c.l.b16 %v104
    %v403 = vunpack.c.l.b16 %v105
    %v404 = vunpack.c.l.b16 %v106
    %v405 = vunpack.c.l.b16 %v107
    %v406 = vunpack.c.l.b16 %v108
    %v407 = vunpack.c.l.b16 %v109
    %v408 = vunpack.c.l.b16 %v110
    %v409 = vunpack.c.l.b16 %v111
    %v410 = vunpack.c.l.b16 %v112
    %v411 = vunpack.c.l.b16 %v113
    %v412 = vunpack.c.l.b16 %v114
    %v413 = vunpack.c.l.b16 %v115
    %v414 = vunpack.c.l.b16 %v116
    %v415 = vunpack.c.l.b16 %v117
    %v416 = vunpack.c.l.b16 %v118
    %v417 = vunpack.c.l.b16 %v119
    %v418 = vunpack.c.l.b16 %v120
    %v419 = vunpack.c.l.b16 %v121
    %v420 = vunpack.c.l.b16 %v122
    %v421 = vunpack.c.l.b16 %v123
    %v422 = vunpack.c.l.b16 %v124
    %v423 = vunpack.c.l.b16 %v125
    %v424 = vunpack.c.l.b16 %v126
    %v425 = vunpack.c.l.b16 %v127
    %v426 = vunpack.c.l.b16 %v128
    %v427 = vunpack.c.l.b16 %v129
    %v428 = vunpack.c.l.b16 %v130
    %v429 = vunpack.c.l.b16 %v131
    %v430 = vunpack.c.l.b16 %v132
    %v431 = vunpack.c.l.b16 %v133
    %v432 = vunpack.c.l.b16 %v134
    %v433 = vunpack.c.l.b16 %v135
    %v434 = vunpack.c.l.b16 %v136
    %v435 = vunpack.c.l.b16 %v137
    %v436 = vunpack.c.l.b16 %v138
    %v437 = vunpack.c.l.b16 %v139
    %v438 = vunpack.c.l.b16 %v140
    %v439 = vunpack.c.l.b16 %v141
    %v440 = vunpack.c.l.b16 %v142
    %v441 = vunpack.c.l.b16 %v143
    %v442 = vunpack.c.l.b16 %v144
    %v443 = vunpack.c.l.b16 %v145
    %v444 = vunpack.c.l.b16 %v146
    %v445 = vunpack.c.l.b16 %v147
    %v446 = vunpack.c.l.b16 %v148
    %v447 = vunpack.c.l.b16 %v149
    %v448 = vunpack.c.l.b16 %v150
    %v449 = vunpack.c.l.b16 %v151
    %v450 = vunpack.c.l.b16 %v152
    %v451 = vunpack.c.l.b16 %v153
    %v452 = vunpack.c.l.b16 %v154
    %v453 = vunpack.c.l.b16 %v155
    %v454 = vunpack.c.l.b16 %v156
    %v455 = vunpack.c.l.b16 %v157
    %v456 = vunpack.c.l.b16 %v158
    %v457 = vunpack.c.l.b16 %v159
    %v458 = vunpack.c.l.b16 %v160
    %v459 = vunpack.c.l.b16 %v161
    %v460 = vunpack.c.l.b16 %v162
    %v461 = vunpack.c.l.b16 %v163
    %v462 = vunpack.c.l.b16 %v164
    %v463 = vunpack.c.l.b16 %v165
    %v464 = vunpack.c.l.b16 %v166
    %v465 = vunpack.c.l.b16 %v167
    %v466 = vunpack.c.l.b16 %v168
    %v467 = vunpack.c.l.b16 %v169
    %v468 = vunpack.c.l.b16 %v170
    %v469 = vunpack.c.l.b16 %v171
    %v470 = vpack.c.b16 %v343, %v342
    %v471 = vpack.c.b16 %v345, %v344
    %v472 = vpack.c.b16 %v347, %v346
    %v473 = vpack.c.b16 %v349, %v348
    %v474 = vpack.c.b16 %v351, %v350
    %v475 = vpack.c.b16 %v353, %v352
    %v476 = vpack.c.b16 %v355, %v354
    %v477 = vpack.c.b16 %v357, %v356
    %v478 = vpack.c.b16 %v359, %v358
    %v479 = vpack.c.b16 %v361, %v360
    %v480 = vpack.c.b16 %v363, %v362
    %v481 = vpack.c.b16 %v365, %v364
    %v482 = vpack.c.b16 %v367, %v366
    %v483 = vpack.c.b16 %v369, %v368
    %v484 = vpack.c.b16 %v371, %v370
    %v485 = vpack.c.b16 %v373, %v372
    %v486 = vpack.c.b16 %v375, %v374
    %v487 = vpack.c.b16 %v377, %v376
    %v488 = vpack.c.b16 %v379, %v378
    %v489 = vpack.c.b16 %v381, %v380
    %v490 = vpack.c.b16 %v383, %v382
    %v491 = vpack.c.b16 %v385, %v384
    %v492 = vpack.c.b16 %v387, %v386
    %v493 = vpack.c.b16 %v389, %v388
    %v494 = vpack.c.b16 %v391, %v390
    %v495 = vpack.c.b16 %v393, %v392
    %v496 = vpack.c.b16 %v395, %v394
    %v497 = vpack.c.b16 %v397, %v396
    %v498 = vpack.c.b16 %v399, %v398
    %v499 = vpack.c.b16 %v401, %v400
    %v500 = vpack.c.b16 %v403, %v402
    %v501 = vpack.c.b16 %v405, %v404
    %v502 = vpack.c.b16 %v407, %v406
    %v503 = vpack.c.b16 %v409, %v408
    %v504 = vpack.c.b16 %v411, %v410
    %v505 = vpack.c.b16 %v413, %v412
    %v506 = vpack.c.b16 %v415, %v414
    %v507 = vpack.c.b16 %v417, %v416
    %v508 = vpack.c.b16 %v419, %v418
    %v509 = vpack.c.b16 %v421, %v420
    %v510 = vpack.c.b16 %v423, %v422
    %v511 = vpack.c.b16 %v425, %v424
    %v512 = vpack.c.b16 %v427, %v426
    %v513 = vpack.c.b16 %v429, %v428
    %v514 = vpack.c.b16 %v431, %v430
    %v515 = vpack.c.b16 %v433, %v432
    %v516 = vpack.c.b16 %v435, %v434
    %v517 = vpack.c.b16 %v437, %v436
    %v518 = vpack.c.b16 %v439, %v438
    %v519 = vpack.c.b16 %v441, %v440
    %v520 = vpack.c.b16 %v443, %v442
    %v521 = vpack.c.b16 %v445, %v444
    %v522 = vpack.c.b16 %v447, %v446
    %v523 = vpack.c.b16 %v449, %v448
    %v524 = vpack.c.b16 %v451, %v450
    %v525 = vpack.c.b16 %v453, %v452
    %v526 = vpack.c.b16 %v455, %v454
    %v527 = vpack.c.b16 %v457, %v456
    %v528 = vpack.c.b16 %v459, %v458
    %v529 = vpack.c.b16 %v461, %v460
    %v530 = vpack.c.b16 %v463, %v462
    %v531 = vpack.c.b16 %v465, %v464
    %v532 = vpack.c.b16 %v467, %v466
    %v533 = vpack.c.b16 %v469, %v468
    %598 = vmatpush.bf16.msra.mxu0 %v477
    %599 = vmatpush.bf16.msra.mxu0 %v476
    %600 = vmatpush.bf16.msra.mxu0 %v475
    %601 = vmatpush.bf16.msra.mxu0 %v474
    %602 = vmatpush.bf16.msra.mxu0 %v473
    %603 = vmatpush.bf16.msra.mxu0 %v472
    %604 = vmatpush.bf16.msra.mxu0 %v471
    %605 = vmatpush.bf16.msra.mxu0 %v470
    %606 = vmatmul.bf16.gmra.mxu0 %v198
    %v607 = vpop.f32.mrf.mxu0
    %v608 = vadd.f32 %v173, %v607
    %v609 = vpop.f32.mrf.mxu0
    %v610 = vadd.f32 %v173, %v609
    %611 = vdwg.mxu0
    %612 = vmatpush.bf16.msra.mxu0 %v485
    %613 = vmatpush.bf16.msra.mxu0 %v484
    %614 = vmatpush.bf16.msra.mxu0 %v483
    %615 = vmatpush.bf16.msra.mxu0 %v482
    %616 = vmatpush.bf16.msra.mxu0 %v481
    %617 = vmatpush.bf16.msra.mxu0 %v480
    %618 = vmatpush.bf16.msra.mxu0 %v479
    %619 = vmatpush.bf16.msra.mxu0 %v478
    %620 = vmatmul.bf16.gmra.mxu0 %v199
    %v621 = vpop.f32.mrf.mxu0
    %v622 = vadd.f32 %v608, %v621
    %v623 = vpop.f32.mrf.mxu0
    %v624 = vadd.f32 %v610, %v623
    %625 = vdwg.mxu0
    %626 = vmatpush.bf16.msra.mxu0 %v493
    %627 = vmatpush.bf16.msra.mxu0 %v492
    %628 = vmatpush.bf16.msra.mxu0 %v491
    %629 = vmatpush.bf16.msra.mxu0 %v490
    %630 = vmatpush.bf16.msra.mxu0 %v489
    %631 = vmatpush.bf16.msra.mxu0 %v488
    %632 = vmatpush.bf16.msra.mxu0 %v487
    %633 = vmatpush.bf16.msra.mxu0 %v486
    %634 = vmatmul.bf16.gmra.mxu0 %v200
    %v635 = vpop.f32.mrf.mxu0
    %v636 = vadd.f32 %v622, %v635
    %v637 = vpop.f32.mrf.mxu0
    %v638 = vadd.f32 %v624, %v637
    %639 = vdwg.mxu0
    %640 = vmatpush.bf16.msra.mxu0 %v501
    %641 = vmatpush.bf16.msra.mxu0 %v500
    %642 = vmatpush.bf16.msra.mxu0 %v499
    %643 = vmatpush.bf16.msra.mxu0 %v498
    %644 = vmatpush.bf16.msra.mxu0 %v497
    %645 = vmatpush.bf16.msra.mxu0 %v496
    %646 = vmatpush.bf16.msra.mxu0 %v495
    %647 = vmatpush.bf16.msra.mxu0 %v494
    %648 = vmatmul.bf16.gmra.mxu0 %v201
    %v649 = vpop.f32.mrf.mxu0
    %v650 = vadd.f32 %v636, %v649
    %v651 = vpop.f32.mrf.mxu0
    %v652 = vadd.f32 %v638, %v651
    %653 = vdwg.mxu0
    %654 = vmatpush.bf16.msra.mxu0 %v509
    %655 = vmatpush.bf16.msra.mxu0 %v508
    %656 = vmatpush.bf16.msra.mxu0 %v507
    %657 = vmatpush.bf16.msra.mxu0 %v506
    %658 = vmatpush.bf16.msra.mxu0 %v505
    %659 = vmatpush.bf16.msra.mxu0 %v504
    %660 = vmatpush.bf16.msra.mxu0 %v503
    %661 = vmatpush.bf16.msra.mxu0 %v502
    %662 = vmatmul.bf16.gmra.mxu0 %v202
    %v663 = vpop.f32.mrf.mxu0
    %v664 = vadd.f32 %v650, %v663
    %v665 = vpop.f32.mrf.mxu0
    %v666 = vadd.f32 %v652, %v665
    %667 = vdwg.mxu0
    %668 = vmatpush.bf16.msra.mxu0 %v517
    %669 = vmatpush.bf16.msra.mxu0 %v516
    %670 = vmatpush.bf16.msra.mxu0 %v515
    %671 = vmatpush.bf16.msra.mxu0 %v514
    %672 = vmatpush.bf16.msra.mxu0 %v513
    %673 = vmatpush.bf16.msra.mxu0 %v512
    %674 = vmatpush.bf16.msra.mxu0 %v511
    %675 = vmatpush.bf16.msra.mxu0 %v510
    %676 = vmatmul.bf16.gmra.mxu0 %v203
    %v677 = vpop.f32.mrf.mxu0
    %v678 = vadd.f32 %v664, %v677
    %v679 = vpop.f32.mrf.mxu0
    %v680 = vadd.f32 %v666, %v679
    %681 = vdwg.mxu0
    %682 = vmatpush.bf16.msra.mxu0 %v525
    %683 = vmatpush.bf16.msra.mxu0 %v524
    %684 = vmatpush.bf16.msra.mxu0 %v523
    %685 = vmatpush.bf16.msra.mxu0 %v522
    %686 = vmatpush.bf16.msra.mxu0 %v521
    %687 = vmatpush.bf16.msra.mxu0 %v520
    %688 = vmatpush.bf16.msra.mxu0 %v519
    %689 = vmatpush.bf16.msra.mxu0 %v518
    %690 = vmatmul.bf16.gmra.mxu0 %v204
    %v691 = vpop.f32.mrf.mxu0
    %v692 = vadd.f32 %v678, %v691
    %v693 = vpop.f32.mrf.mxu0
    %v694 = vadd.f32 %v680, %v693
    %695 = vdwg.mxu0
    %696 = vmatpush.bf16.msra.mxu0 %v533
    %697 = vmatpush.bf16.msra.mxu0 %v532
    %698 = vmatpush.bf16.msra.mxu0 %v531
    %699 = vmatpush.bf16.msra.mxu0 %v530
    %700 = vmatpush.bf16.msra.mxu0 %v529
    %701 = vmatpush.bf16.msra.mxu0 %v528
    %702 = vmatpush.bf16.msra.mxu0 %v527
    %703 = vmatpush.bf16.msra.mxu0 %v526
    %704 = vmatmul.bf16.gmra.mxu0 %v205
    %v705 = vpop.f32.mrf.mxu0
    %v706 = vadd.f32 %v692, %v705
    %v707 = vpop.f32.mrf.mxu0
    %v708 = vadd.f32 %v694, %v707
    %709 = vdwg.mxu0
    %v710 = vmax.f32 %v706, 0.0
    %v711 = vmax.f32 %v708, 0.0
    %v712 = vpack.c.bf16 %v711, %v710
    %v713 = vld [vmem:[%s2] sm:$0xf]
    %v714 = vld [vmem:[%s2 + $0x4] sm:$0xf]
    %v715 = vld [vmem:[%s2 + $0x8] sm:$0xf]
    %v716 = vld [vmem:[%s2 + $0xc] sm:$0xf]
    %v717 = vld [vmem:[%s2 + $0x10] sm:$0xf]
    %v718 = vld [vmem:[%s2 + $0x14] sm:$0xf]
    %v719 = vld [vmem:[%s2 + $0x18] sm:$0xf]
    %v720 = vld [vmem:[%s2 + $0x1c] sm:$0xf]
    %v721 = vld [vmem:[%s2 + $0x20] sm:$0xf]
    %v722 = vld [vmem:[%s2 + $0x24] sm:$0xf]
    %v723 = vld [vmem:[%s2 + $0x28] sm:$0xf]
    %v724 = vld [vmem:[%s2 + $0x2c] sm:$0xf]
    %v725 = vld [vmem:[%s2 + $0x30] sm:$0xf]
    %v726 = vld [vmem:[%s2 + $0x34] sm:$0xf]
    %v727 = vld [vmem:[%s2 + $0x38] sm:$0xf]
    %v728 = vld [vmem:[%s2 + $0x3c] sm:$0xf]
    %v729 = vld [vmem:[%s4 + $0x1] sm:$0x1]
    %v730 = vperm.slane %v729, 0
    %v747 = vunpack.c.l.b16 %v713
    %v748 = vunpack.c.l.b16 %v714
    %v749 = vunpack.c.l.b16 %v715
    %v750 = vunpack.c.l.b16 %v716
    %v751 = vunpack.c.l.b16 %v717
    %v752 = vunpack.c.l.b16 %v718
    %v753 = vunpack.c.l.b16 %v719
    %v754 = vunpack.c.l.b16 %v720
    %v755 = vunpack.c.l.b16 %v721
    %v756 = vunpack.c.l.b16 %v722
    %v757 = vunpack.c.l.b16 %v723
    %v758 = vunpack.c.l.b16 %v724
    %v759 = vunpack.c.l.b16 %v725
    %v760 = vunpack.c.l.b16 %v726
    %v761 = vunpack.c.l.b16 %v727
    %v762 = vunpack.c.l.b16 %v728
    %v763 = vpack.c.b16 %v748, %v747
    %v764 = vpack.c.b16 %v750, %v749
    %v765 = vpack.c.b16 %v752, %v751
    %v766 = vpack.c.b16 %v754, %v753
    %v767 = vpack.c.b16 %v756, %v755
    %v768 = vpack.c.b16 %v758, %v757
    %v769 = vpack.c.b16 %v760, %v759
    %v770 = vpack.c.b16 %v762, %v761
    %779 = vmatpush.bf16.msra.mxu0 %v770
    %780 = vmatpush.bf16.msra.mxu0 %v769
    %781 = vmatpush.bf16.msra.mxu0 %v768
    %782 = vmatpush.bf16.msra.mxu0 %v767
    %783 = vmatpush.bf16.msra.mxu0 %v766
    %784 = vmatpush.bf16.msra.mxu0 %v765
    %785 = vmatpush.bf16.msra.mxu0 %v764
    %786 = vmatpush.bf16.msra.mxu0 %v763
    %787 = vmatmul.bf16.gmra.mxu0 %v712
    %v788 = vpop.f32.mrf.mxu0
    %v789 = vadd.f32 %v730, %v788
    %v790 = vpop.f32.mrf.mxu0
    %v791 = vadd.f32 %v730, %v790
    %792 = vdwg.mxu0
    %v793 = vmax.f32 %v789, 0.0
    %v794 = vmax.f32 %v791, 0.0
    %v795 = vpack.c.bf16 %v794, %v793
    %v796 = vld [vmem:[%s3] sm:$0xf]
    %v797 = vld [vmem:[%s3 + $0x4] sm:$0xf]
    %v798 = vld [vmem:[%s3 + $0x8] sm:$0xf]
    %v799 = vld [vmem:[%s3 + $0xc] sm:$0xf]
    %v800 = vld [vmem:[%s3 + $0x10] sm:$0xf]
    %v801 = vld [vmem:[%s3 + $0x14] sm:$0xf]
    %v802 = vld [vmem:[%s3 + $0x18] sm:$0xf]
    %v803 = vld [vmem:[%s3 + $0x1c] sm:$0xf]
    %v804 = vld [vmem:[%s3 + $0x20] sm:$0xf]
    %v805 = vld [vmem:[%s3 + $0x24] sm:$0xf]
    %v806 = vld [vmem:[%s3 + $0x28] sm:$0xf]
    %v807 = vld [vmem:[%s3 + $0x2c] sm:$0xf]
    %v808 = vld [vmem:[%s3 + $0x30] sm:$0xf]
    %v809 = vld [vmem:[%s3 + $0x34] sm:$0xf]
    %v810 = vld [vmem:[%s3 + $0x38] sm:$0xf]
    %v811 = vld [vmem:[%s3 + $0x3c] sm:$0xf]
    %v812 = vld [vmem:[%s4 + $0x2] sm:$0x1]
    %v813 = vperm.slane %v812, 0
    %v830 = vunpack.c.l.b16 %v796
    %v831 = vunpack.c.l.b16 %v797
    %v832 = vunpack.c.l.b16 %v798
    %v833 = vunpack.c.l.b16 %v799
    %v834 = vunpack.c.l.b16 %v800
    %v835 = vunpack.c.l.b16 %v801
    %v836 = vunpack.c.l.b16 %v802
    %v837 = vunpack.c.l.b16 %v803
    %v838 = vunpack.c.l.b16 %v804
    %v839 = vunpack.c.l.b16 %v805
    %v840 = vunpack.c.l.b16 %v806
    %v841 = vunpack.c.l.b16 %v807
    %v842 = vunpack.c.l.b16 %v808
    %v843 = vunpack.c.l.b16 %v809
    %v844 = vunpack.c.l.b16 %v810
    %v845 = vunpack.c.l.b16 %v811
    %v846 = vpack.c.b16 %v831, %v830
    %v847 = vpack.c.b16 %v833, %v832
    %v848 = vpack.c.b16 %v835, %v834
    %v849 = vpack.c.b16 %v837, %v836
    %v850 = vpack.c.b16 %v839, %v838
    %v851 = vpack.c.b16 %v841, %v840
    %v852 = vpack.c.b16 %v843, %v842
    %v853 = vpack.c.b16 %v845, %v844
    %862 = vmatpush.bf16.msra.mxu0 %v853
    %863 = vmatpush.bf16.msra.mxu0 %v852
    %864 = vmatpush.bf16.msra.mxu0 %v851
    %865 = vmatpush.bf16.msra.mxu0 %v850
    %866 = vmatpush.bf16.msra.mxu0 %v849
    %867 = vmatpush.bf16.msra.mxu0 %v848
    %868 = vmatpush.bf16.msra.mxu0 %v847
    %869 = vmatpush.bf16.msra.mxu0 %v846
    %870 = vmatmul.bf16.gmra.mxu0 %v795
    %v871 = vpop.f32.mrf.mxu0
    %v872 = vadd.f32 %v813, %v871
    %v873 = vpop.f32.mrf.mxu0
    %v874 = vadd.f32 %v813, %v873
    %875 = vdwg.mxu0
    %876 = vst [vmem:[%s5] sm:$0xff] %v872
    %877 = vst [vmem:[%s5 + $0x8] sm:$0xff] %v874
    // Predicated region
    $region26: #{mlp_forward.1} parent=1 // pred_check
      _
    $region27: #{mlp_forward.1} parent=1 // pred_check_branch
      %879 = sbr.rel (0) target = $region29
    $region28: #{mlp_forward.1} parent=1 // pred_region
      _
    $region29: #{mlp_forward.1} parent=1 // pred_fallthru
      _
    // Predicated region
    $region30: #{mlp_forward.1} parent=1 // pred_check
      _
    $region31: #{mlp_forward.1} parent=1 // pred_check_branch
      %881 = sbr.rel (0) target = $region33
    $region32: #{mlp_forward.1} parent=1 // pred_region
      _
    $region33: #{mlp_forward.1} parent=1 // pred_fallthru
      _
    %882 = vsyncpa [#allocation3], 1

</llo_original>
